<compile_context>
chip_gen: v7x
topology: tpu7x:2x2x1
jax: 0.10.0
libtpu: 0.0.40
codegen_flags: <defaults>
</compile_context>

<pallas_src>
import jax
import jax.numpy as jnp
from jax.experimental import pallas as pl
from jax.experimental.pallas import tpu as pltpu


def mf_kernel(ue_ref, ie_ref, bias_ref, out_ref):
    """rating_row = sum(u * v, factor axis) + (user_bias + item_bias + global_bias).

    ue_ref / ie_ref : (F, tb)  gathered factor rows, batch on LANES
    bias_ref        : (1, tb)  lane-dense pre-folded bias row
    out_ref         : (1, tb)  lane-dense rating row
    """
    u = ue_ref[...]
    v = ie_ref[...]
    # NOTE: tables are f32 today; if they ever move to bf16, cast u/v to f32
    # here so the factor-axis accumulation stays in f32.
    dot = jnp.sum(u * v, axis=0, keepdims=True)          # (1, tb) sublane reduce
    out_ref[...] = dot + bias_ref[...]


def matrix_factorization_forward(user_ids, item_ids, params, *, batch_tile=8192):
    """Forward pass matching MatrixFactorization.forward (returns shape [B])."""
    assert batch_tile % 128 == 0, "batch_tile must be a multiple of 128"
    B = user_ids.shape[0]
    F = params["user_factors"].shape[1]

    # --- tile selection ------------------------------------------------------
    lane_tiles = pl.cdiv(B, 128)                     # number of 128-lane tiles in the batch
    tb = min(batch_tile, lane_tiles * 128)
    if lane_tiles > 1:
        # Ensure >= 2 grid steps so v7x's two TensorCores both get work
        # ("parallel" axis).  Near-neutral on single-TC v5e/v6e.
        tb = min(tb, pl.cdiv(lane_tiles, 2) * 128)
    # Keep double-buffered factor streams comfortably under scoped VMEM
    # defaults (16 MiB v5e / 32 MiB v6e+): budget ~8 MiB for the two factor
    # operands (2 operands x 2 buffers x F x 4B per batch column).
    vmem_budget = 8 * 1024 * 1024
    max_tb_vmem = max(128, (vmem_budget // (4 * F * 4)) // 128 * 128)
    tb = min(tb, max_tb_vmem)

    b_pad = pl.cdiv(B, tb) * tb
    pad = b_pad - B

    # Pad the ids (padding hits valid row 0; padded outputs sliced off below).
    uid = jnp.pad(user_ids.astype(jnp.int32), (0, pad))
    iid = jnp.pad(item_ids.astype(jnp.int32), (0, pad))

    # --- glue: embedding lookups, emitted directly in (F, b_pad) layout ------
    uft = params["user_factors"].T                   # (F, num_users) one-time, tiny
    ift = params["item_factors"].T                   # (F, num_items)
    ue = jnp.take(uft, uid, axis=1)                  # (F, b_pad), batch on lanes
    ie = jnp.take(ift, iid, axis=1)                  # (F, b_pad)

    gb = params["global_bias"][0]
    bias_row = (
        jnp.take(params["user_biases"][:, 0], uid)
        + jnp.take(params["item_biases"][:, 0], iid)
        + gb
    ).reshape(1, b_pad)

    grid = (b_pad // tb,)
    out = pl.pallas_call(
        mf_kernel,
        out_shape=jax.ShapeDtypeStruct((1, b_pad), jnp.float32),
        grid=grid,
        in_specs=[
            pl.BlockSpec((F, tb), lambda i: (0, i)),   # user factors, lane-dense
            pl.BlockSpec((F, tb), lambda i: (0, i)),   # item factors, lane-dense
            pl.BlockSpec((1, tb), lambda i: (0, i)),   # folded bias row
        ],
        out_specs=pl.BlockSpec((1, tb), lambda i: (0, i)),
        compiler_params=pltpu.CompilerParams(
            dimension_semantics=("parallel",)),        # megacore-shardable batch axis
    )(ue, ie, bias_row)

    # PyTorch returns a [B] rating vector.
    return out[0, :B]


def init_params(key, num_users, num_items, n_factors):
    k1, k2, k3, k4 = jax.random.split(key, 4)
    return {
        # .normal_(0, 0.01) on the factor tables
        "user_factors": 0.01 * jax.random.normal(k1, (num_users, n_factors), jnp.float32),
        "item_factors": 0.01 * jax.random.normal(k2, (num_items, n_factors), jnp.float32),
        # nn.Embedding default init: N(0, 1)
        "user_biases": jax.random.normal(k3, (num_users, 1), jnp.float32),
        "item_biases": jax.random.normal(k4, (num_items, 1), jnp.float32),
        # nn.Parameter(torch.zeros(1))
        "global_bias": jnp.zeros((1,), jnp.float32),
    }


if __name__ == "__main__":
    num_users, num_items, n_factors = 64, 96, 32
    batch = 300   # NOT a multiple of the tile -> exercises padding and a 2-step grid

    key = jax.random.PRNGKey(0)
    kp, ku, ki = jax.random.split(key, 3)
    params = init_params(kp, num_users, num_items, n_factors)

    user_ids = jax.random.randint(ku, (batch,), 0, num_users, jnp.int32)
    item_ids = jax.random.randint(ki, (batch,), 0, num_items, jnp.int32)

    ratings = matrix_factorization_forward(user_ids, item_ids, params)
    jax.block_until_ready(ratings)

    # pure-JAX reference check
    ref = (
        jnp.sum(params["user_factors"][user_ids] * params["item_factors"][item_ids], axis=1)
        + params["user_biases"][user_ids][:, 0]
        + params["item_biases"][item_ids][:, 0]
        + params["global_bias"][0]
    )
    assert ratings.shape == (batch,)
    assert jnp.allclose(ratings, ref, atol=1e-5), "mismatch vs reference"

    print("KERNEL_OK")
</pallas_src>

<mosaic_0001>
module attributes {stable_mosaic.version = 11 : i64} {
  func.func @mf_kernel(%arg0: i32, %arg1: memref<32x256xf32, #tpu.memory_space<vmem>>, %arg2: memref<32x256xf32, #tpu.memory_space<vmem>>, %arg3: memref<1x256xf32, #tpu.memory_space<vmem>>, %arg4: memref<1x256xf32, #tpu.memory_space<vmem>>) attributes {dimension_semantics = [#tpu.dimension_semantics<parallel>], iteration_bounds = array<i64: 2>, scalar_prefetch = 0 : i64, scratch_operands = 0 : i64, tpu.core_type = #tpu.core_type<tc>, window_params = [{transform_indices = @transform_0, window_bounds = array<i64: 32, 256>}, {transform_indices = @transform_1, window_bounds = array<i64: 32, 256>}, {transform_indices = @transform_2, window_bounds = array<i64: 1, 256>}, {transform_indices = @transform_3, window_bounds = array<i64: 1, 256>}]} {
    %c0 = arith.constant 0 : index
    %c0_0 = arith.constant 0 : index
    %0 = vector.load %arg1[%c0, %c0_0] : memref<32x256xf32, #tpu.memory_space<vmem>>, vector<32x256xf32>
    %c0_1 = arith.constant 0 : index
    %c0_2 = arith.constant 0 : index
    %1 = vector.load %arg2[%c0_1, %c0_2] : memref<32x256xf32, #tpu.memory_space<vmem>>, vector<32x256xf32>
    %2 = arith.mulf %0, %1 : vector<32x256xf32>
    %cst = arith.constant dense<0.000000e+00> : vector<256xf32>
    %3 = vector.multi_reduction <add>, %2, %cst [0] : vector<32x256xf32> to vector<256xf32>
    %4 = vector.shape_cast %3 : vector<256xf32> to vector<1x256xf32>
    %c0_3 = arith.constant 0 : index
    %c0_4 = arith.constant 0 : index
    %5 = vector.load %arg3[%c0_3, %c0_4] : memref<1x256xf32, #tpu.memory_space<vmem>>, vector<1x256xf32>
    %6 = arith.addf %4, %5 : vector<1x256xf32>
    %c0_5 = arith.constant 0 : index
    %c0_6 = arith.constant 0 : index
    %7 = vector.load %arg4[%c0_5, %c0_6] : memref<1x256xf32, #tpu.memory_space<vmem>>, vector<1x256xf32>
    tpu.vector_store %arg4[%c0_5, %c0_6], %6 {strides = array<i32>} : memref<1x256xf32, #tpu.memory_space<vmem>>, vector<1x256xf32>,
    return
  }
  func.func @transform_0(%arg0: i32) -> (i32, i32) {
    %c0_i32 = arith.constant 0 : i32
    %c0_i32_0 = arith.constant 0 : i32
    return %c0_i32, %arg0 : i32, i32
  }
  func.func @transform_1(%arg0: i32) -> (i32, i32) {
    %c0_i32 = arith.constant 0 : i32
    %c0_i32_0 = arith.constant 0 : i32
    return %c0_i32, %arg0 : i32, i32
  }
  func.func @transform_2(%arg0: i32) -> (i32, i32) {
    %c0_i32 = arith.constant 0 : i32
    %c0_i32_0 = arith.constant 0 : i32
    return %c0_i32, %arg0 : i32, i32
  }
  func.func @transform_3(%arg0: i32) -> (i32, i32) {
    %c0_i32 = arith.constant 0 : i32
    %c0_i32_0 = arith.constant 0 : i32
    return %c0_i32, %arg0 : i32, i32
  }
}

</mosaic_0001>

<llo_original>
// kernel: tpu_custom_call.1
$region0: #{tpu_custom_call.1}
  #allocation0 [shape = 'u32[]', space=smem, size = 0x4, offset = 0x4, fixed_abs, tag = 'smem constant byte address 0x4 - core index']
  #allocation1 [shape = 'u32[144,128]{1,0:T(1,128)}', space=vmem, size = 0x12000, scoped, tag = 'internal scratch']
  %s0 = inlined_call_operand.hbm [shape: f32[32,512], index: 0, kind: input, shape index: {}]
  %s1 = inlined_call_operand.hbm [shape: f32[32,512], index: 1, kind: input, shape index: {}]
  %s2 = inlined_call_operand.vmem [shape: f32[1,512], index: 2, kind: input, shape index: {}]
  %s3 = inlined_call_operand.hbm [shape: f32[1,512], index: 3, kind: output, shape index: {}]
  %s4 = sld [smem:[#allocation0]]
  $region53: #{tpu_custom_call.1} parent=0
    _
  %s6 = ssub.s32 1, %s4
  %s7 = scalar_select 0, %s6, %s4
  $region1: #{tpu_custom_call.1} parent=0
    #allocation2 [shape = 'u8[65536]{0}', space=vmem, size = 0x10000, scoped, tag = 'input window, operand 0']
    #allocation3 [shape = 's32[2]{0}', space=sflag, size = 0x8, scoped, tag = 'scoped memory for tpu_custom_call.1']
    #allocation4 [shape = 's32[2]{0}', space=sflag, size = 0x8, scoped, tag = 'scoped memory for tpu_custom_call.1']
    #allocation5 [shape = 'u8[65536]{0}', space=vmem, size = 0x10000, scoped, tag = 'input window, operand 1']
    #allocation6 [shape = 's32[2]{0}', space=sflag, size = 0x8, scoped, tag = 'scoped memory for tpu_custom_call.1']
    #allocation7 [shape = 'u8[2048]{0}', space=vmem, size = 0x800, scoped, tag = 'output window, operand 0']
    %8 = vsyncpa [#allocation3], 0
    %s9 = scalar_lea.sflag [#allocation3], 1
    %10 = vsyncpa %s9, 0
    %11 = vsyncpa [#allocation6], 0
    %s12 = scalar_lea.sflag [#allocation6], 1
    %13 = vsyncpa %s12, 0
    %14 = vsyncpa [#allocation4], 0
    %s15 = scalar_lea.sflag [#allocation4], 1
    %16 = vsyncpa %s15, 0
    loop: start=0, step=1, limit=4
    $region2: #{tpu_custom_call.1} parent=1 // loop_pre_header
      _
    $region3: #{tpu_custom_call.1} parent=1 // loop_header
      %s18 = sphi 0, %s22
      %p19 = scmp.ge.s32.totalorder %s18, 4
      %s28 = sphi 0, %s30
      %s31 = sphi 0, %s28
      %s32 = sphi 0, %s31
      %s48 = sphi 0, %s32
      %s54 = sphi 0, %s56
      %s57 = sphi 0, %s54
      %s58 = sphi 0, %s57
      %s74 = sphi 0, %s58
      %s80 = sphi 0, %s82
      %s83 = sphi 0, %s80
      %s84 = sphi 0, %s83
      %s100 = sphi 0, %s84
      %s106 = sphi 0, %s108
      %s109 = sphi 0, %s106
      %s110 = sphi 0, %s109
      %s126 = sphi 0, %s110
    $region4: #{tpu_custom_call.1} parent=1 // loop_header_branch
      %21 = sbr.rel (%p19) target = $region8
    $region5: #{tpu_custom_call.1} parent=1 // loop_body
      %s23 = ssub.s32 %s18, 1
      %s24 = ssub.s32 %s18, 2
      %s25 = sadd.s32 %s18, 1
      %s26 = ssub.s32 %s18, %s25
      %p27 = scmp.eq.s32.totalorder %s26, 0
      %s29 = sadd.s32 %s28, 1
      %s30 = scalar_select %p27, %s28, %s29
      %p33 = pneg %p27
      %p34 = scmp.eq.s32.totalorder %s18, 1
      %p35 = por %p33, %p34
      %p36 = scmp.ne.s32.totalorder %s28, %s31
      %p37 = scmp.eq.s32.totalorder %s18, 0
      %p38 = por %p36, %p37
      %p39 = scmp.ne.s32.totalorder %s28, %s31
      %p40 = scmp.eq.s32.totalorder %s23, 1
      %p41 = por %p39, %p40
      %p42 = scmp.ne.s32.totalorder %s31, %s32
      %p43 = scmp.eq.s32.totalorder %s23, 0
      %p44 = por %p42, %p43
      %p45 = scmp.ne.s32.totalorder %s31, %s32
      %p46 = scmp.eq.s32.totalorder %s24, 1
      %p47 = por %p45, %p46
      %p49 = scmp.ne.s32.totalorder %s32, %s48
      %p50 = scmp.eq.s32.totalorder %s24, 0
      %p51 = por %p49, %p50
      %s52 = ssub.s32 %s18, %s25
      %p53 = scmp.eq.s32.totalorder %s52, 0
      %s55 = sadd.s32 %s54, 1
      %s56 = scalar_select %p53, %s54, %s55
      %p59 = pneg %p53
      %p60 = scmp.eq.s32.totalorder %s18, 1
      %p61 = por %p59, %p60
      %p62 = scmp.ne.s32.totalorder %s54, %s57
      %p63 = scmp.eq.s32.totalorder %s18, 0
      %p64 = por %p62, %p63
      %p65 = scmp.ne.s32.totalorder %s54, %s57
      %p66 = scmp.eq.s32.totalorder %s23, 1
      %p67 = por %p65, %p66
      %p68 = scmp.ne.s32.totalorder %s57, %s58
      %p69 = scmp.eq.s32.totalorder %s23, 0
      %p70 = por %p68, %p69
      %p71 = scmp.ne.s32.totalorder %s57, %s58
      %p72 = scmp.eq.s32.totalorder %s24, 1
      %p73 = por %p71, %p72
      %p75 = scmp.ne.s32.totalorder %s58, %s74
      %p76 = scmp.eq.s32.totalorder %s24, 0
      %p77 = por %p75, %p76
      %s78 = ssub.s32 %s18, %s25
      %p79 = scmp.eq.s32.totalorder %s78, 0
      %s81 = sadd.s32 %s80, 1
      %s82 = scalar_select %p79, %s80, %s81
      %p85 = pneg %p79
      %p86 = scmp.eq.s32.totalorder %s18, 1
      %p87 = por %p85, %p86
      %p88 = scmp.ne.s32.totalorder %s80, %s83
      %p89 = scmp.eq.s32.totalorder %s18, 0
      %p90 = por %p88, %p89
      %p91 = scmp.ne.s32.totalorder %s80, %s83
      %p92 = scmp.eq.s32.totalorder %s23, 1
      %p93 = por %p91, %p92
      %p94 = scmp.ne.s32.totalorder %s83, %s84
      %p95 = scmp.eq.s32.totalorder %s23, 0
      %p96 = por %p94, %p95
      %p97 = scmp.ne.s32.totalorder %s83, %s84
      %p98 = scmp.eq.s32.totalorder %s24, 1
      %p99 = por %p97, %p98
      %p101 = scmp.ne.s32.totalorder %s84, %s100
      %p102 = scmp.eq.s32.totalorder %s24, 0
      %p103 = por %p101, %p102
      %s104 = ssub.s32 %s18, %s25
      %p105 = scmp.eq.s32.totalorder %s104, 0
      %s107 = sadd.s32 %s106, 1
      %s108 = scalar_select %p105, %s106, %s107
      %p111 = pneg %p105
      %p112 = scmp.eq.s32.totalorder %s18, 1
      %p113 = por %p111, %p112
      %p114 = scmp.ne.s32.totalorder %s106, %s109
      %p115 = scmp.eq.s32.totalorder %s18, 0
      %p116 = por %p114, %p115
      %p117 = scmp.ne.s32.totalorder %s106, %s109
      %p118 = scmp.eq.s32.totalorder %s23, 1
      %p119 = por %p117, %p118
      %p120 = scmp.ne.s32.totalorder %s109, %s110
      %p121 = scmp.eq.s32.totalorder %s23, 0
      %p122 = por %p120, %p121
      %p123 = scmp.ne.s32.totalorder %s109, %s110
      %p124 = scmp.eq.s32.totalorder %s24, 1
      %p125 = por %p123, %p124
      %p127 = scmp.ne.s32.totalorder %s110, %s126
      %p128 = scmp.eq.s32.totalorder %s24, 0
      %p129 = por %p127, %p128
      %p130 = scmp.le.s32.totalorder 1, %s18
      %p131 = scmp.lt.s32.totalorder %s18, 3
      %p132 = pnand %p130, %p131
      %p133 = pneg %p132
      // Predicated region
      $region9: #{tpu_custom_call.1} parent=5 // pred_check
        _
      $region10: #{tpu_custom_call.1} parent=5 // pred_check_branch
        %135 = sbr.rel (%p132) target = $region12
      $region11: #{tpu_custom_call.1} parent=5 // pred_region
        %s136 = ssub.s32 %s18, 1
      $region12: #{tpu_custom_call.1} parent=5 // pred_fallthru
        _
      %p137 = scmp.lt.s32.totalorder %s18, 2
      // Predicated region
      $region13: #{tpu_custom_call.1} parent=5 // pred_check
        %p138 = pneg %p137
      $region14: #{tpu_custom_call.1} parent=5 // pred_check_branch
        %140 = sbr.rel (%p138) target = $region16
      $region15: #{tpu_custom_call.1} parent=5 // pred_region
        // Predicated region
        $region17: #{tpu_custom_call.1} parent=15 // pred_check
          %p141 = pneg %p38
        $region18: #{tpu_custom_call.1} parent=15 // pred_check_branch
          %143 = sbr.rel (%p141) target = $region20
        $region19: #{tpu_custom_call.1} parent=15 // pred_region
          %s144 = sand.u32 %s28, 1
          %s145 = scalar_lea.sflag [#allocation3], %s144
          %s146 = sand.u32 %s28, 1
          %s147 = smul.addr %s146, 64
          %s148 = scalar_lea.vmem [#allocation2], %s147
          %s149 = smul.u32 2, %s18
          %s151 = ssub.s32 1024, 1024
          %152 = vsyncadd %s145, %s151
          %s153 = smul.addr %s149, 128
          %s154 = scalar_lea.hbm %s0, %s153
          %s155 = sshll.u32 %s148, 4
          %s156 = int_to_ptr.vmem [resolvable:$true] %s155
          %161 = dma.hbm_to_vmem [thread:$0]  %s154, 1024, %s156, %s145, 512, 256, 16
        $region20: #{tpu_custom_call.1} parent=15 // pred_fallthru
          _
        // Predicated region
        $region21: #{tpu_custom_call.1} parent=15 // pred_check
          %p162 = pneg %p64
        $region22: #{tpu_custom_call.1} parent=15 // pred_check_branch
          %164 = sbr.rel (%p162) target = $region24
        $region23: #{tpu_custom_call.1} parent=15 // pred_region
          %s165 = sand.u32 %s54, 1
          %s166 = scalar_lea.sflag [#allocation6], %s165
          %s167 = sand.u32 %s54, 1
          %s168 = smul.addr %s167, 64
          %s169 = scalar_lea.vmem [#allocation5], %s168
          %s170 = smul.u32 2, %s18
          %s172 = ssub.s32 1024, 1024
          %173 = vsyncadd %s166, %s172
          %s174 = smul.addr %s170, 128
          %s175 = scalar_lea.hbm %s1, %s174
          %s176 = sshll.u32 %s169, 4
          %s177 = int_to_ptr.vmem [resolvable:$true] %s176
          %182 = dma.hbm_to_vmem [thread:$0]  %s175, 1024, %s177, %s166, 512, 256, 16
        $region24: #{tpu_custom_call.1} parent=15 // pred_fallthru
          _
        // Predicated region
        $region25: #{tpu_custom_call.1} parent=15 // pred_check
          %p183 = pneg %p90
        $region26: #{tpu_custom_call.1} parent=15 // pred_check_branch
          %185 = sbr.rel (%p183) target = $region28
        $region27: #{tpu_custom_call.1} parent=15 // pred_region
          %s186 = smul.u32 2, %s18
          %p187 = scmp.lt.s32.totalorder %s186, 3
          %s188 = scalar_select %p187, %s186, 3
          %s189 = scalar_lea.vmem %s2, %s188
          %s190 = smul.u32 2, %s18
        $region28: #{tpu_custom_call.1} parent=15 // pred_fallthru
          _
      $region16: #{tpu_custom_call.1} parent=5 // pred_fallthru
        _
      %p191 = scmp.le.s32.totalorder 1, %s18
      %p192 = scmp.lt.s32.totalorder %s18, 3
      %p193 = pnand %p191, %p192
      %p194 = pneg %p193
      // Predicated region
      $region29: #{tpu_custom_call.1} parent=5 // pred_check
        _
      $region30: #{tpu_custom_call.1} parent=5 // pred_check_branch
        %196 = sbr.rel (%p193) target = $region32
      $region31: #{tpu_custom_call.1} parent=5 // pred_region
        %s197 = ssub.s32 %s18, 1
        %s198 = sand.u32 %s31, 1
        %s199 = scalar_lea.sflag [#allocation3], %s198
        %s200 = sand.u32 %s31, 1
        %s201 = smul.addr %s200, 64
        %s202 = scalar_lea.vmem [#allocation2], %s201
        // Predicated region
        $region33: #{tpu_custom_call.1} parent=31 // pred_check
          %p203 = pneg %p44
        $region34: #{tpu_custom_call.1} parent=31 // pred_check_branch
          %205 = sbr.rel (%p203) target = $region36
        $region35: #{tpu_custom_call.1} parent=31 // pred_region
          %206 = dma.done %s199, 1024
        $region36: #{tpu_custom_call.1} parent=31 // pred_fallthru
          _
        %s207 = sand.u32 %s57, 1
        %s208 = scalar_lea.sflag [#allocation6], %s207
        %s209 = sand.u32 %s57, 1
        %s210 = smul.addr %s209, 64
        %s211 = scalar_lea.vmem [#allocation5], %s210
        // Predicated region
        $region37: #{tpu_custom_call.1} parent=31 // pred_check
          %p212 = pneg %p70
        $region38: #{tpu_custom_call.1} parent=31 // pred_check_branch
          %214 = sbr.rel (%p212) target = $region40
        $region39: #{tpu_custom_call.1} parent=31 // pred_region
          %215 = dma.done %s208, 1024
        $region40: #{tpu_custom_call.1} parent=31 // pred_fallthru
          _
        %s216 = sand.u32 %s31, 1
        %s217 = scalar_lea.sflag [#allocation3], %s216
        %s218 = sand.u32 %s31, 1
        %s219 = smul.addr %s218, 64
        %s220 = scalar_lea.vmem [#allocation2], %s219
        %p221 = pneg %p44
        %p222 = pneg %p41
        %s223 = sand.u32 %s57, 1
        %s224 = scalar_lea.sflag [#allocation6], %s223
        %s225 = sand.u32 %s57, 1
        %s226 = smul.addr %s225, 64
        %s227 = scalar_lea.vmem [#allocation5], %s226
        %p228 = pneg %p70
        %p229 = pneg %p67
        %s230 = smul.u32 2, %s23
        %p231 = scmp.lt.s32.totalorder %s230, 3
        %s232 = scalar_select %p231, %s230, 3
        %s233 = scalar_lea.vmem %s2, %s232
        %p234 = pneg %p96
        %p235 = pneg %p93
        %p236 = pneg %p122
        %p237 = pneg %p119
        %s238 = sand.u32 %s109, 1
        %s239 = scalar_lea.sflag [#allocation4], %s238
        %s240 = sand.u32 %s109, 1
        %s241 = smul.addr %s240, 2
        %s242 = scalar_lea.vmem [#allocation7], %s241
        %s243 = smul.u32 2, %s23
        %s244 = smul.u32 2, %s23
        %s245 = smul.u32 2, %s23
        %p246 = scmp.lt.s32.totalorder %s245, 3
        %s247 = scalar_select %p246, %s245, 3
        %s248 = scalar_lea.vmem %s2, %s247
        %s249 = smul.u32 2, %s23
        %s250 = smul.u32 2, %s23
        %v251 = vld [vmem:[%s202] sm:$0xff]
        %v252 = vld [vmem:[%s202 + $0x8] sm:$0xff]
        %v253 = vld [vmem:[%s202 + $0x10] sm:$0xff]
        %v254 = vld [vmem:[%s202 + $0x18] sm:$0xff]
        %v255 = vld [vmem:[%s202 + $0x20] sm:$0xff]
        %v256 = vld [vmem:[%s202 + $0x28] sm:$0xff]
        %v257 = vld [vmem:[%s202 + $0x30] sm:$0xff]
        %v258 = vld [vmem:[%s202 + $0x38] sm:$0xff]
        %v259 = vld [vmem:[%s211] sm:$0xff]
        %v260 = vld [vmem:[%s211 + $0x8] sm:$0xff]
        %v261 = vld [vmem:[%s211 + $0x10] sm:$0xff]
        %v262 = vld [vmem:[%s211 + $0x18] sm:$0xff]
        %v263 = vld [vmem:[%s211 + $0x20] sm:$0xff]
        %v264 = vld [vmem:[%s211 + $0x28] sm:$0xff]
        %v265 = vld [vmem:[%s211 + $0x30] sm:$0xff]
        %v266 = vld [vmem:[%s211 + $0x38] sm:$0xff]
        %v267 = vmul.f32 %v251, %v259
        %v268 = vmul.f32 %v252, %v260
        %v269 = vmul.f32 %v253, %v261
        %v270 = vmul.f32 %v254, %v262
        %v271 = vmul.f32 %v255, %v263
        %v272 = vmul.f32 %v256, %v264
        %v273 = vmul.f32 %v257, %v265
        %v274 = vmul.f32 %v258, %v266
        %v275 = vadd.f32 %v267, %v269
        %v276 = vadd.f32 %v275, %v271
        %v277 = vadd.f32 %v276, %v273
        %v278 = vrot.slane %v277, 4
        %v279 = vadd.f32 %v277, %v278
        %v280 = vrot.slane %v279, 2
        %v281 = vadd.f32 %v279, %v280
        %v282 = vrot.slane %v281, 1
        %v283 = vadd.f32 %v281, %v282
        %v284 = vadd.f32 %v268, %v270
        %v285 = vadd.f32 %v284, %v272
        %v286 = vadd.f32 %v285, %v274
        %v287 = vrot.slane %v286, 4
        %v288 = vadd.f32 %v286, %v287
        %v289 = vrot.slane %v288, 2
        %v290 = vadd.f32 %v288, %v289
        %v291 = vrot.slane %v290, 1
        %v292 = vadd.f32 %v290, %v291
        %v293 = vld [vmem:[%s248] sm:$0x3]
        %v295 = vlaneseq
        %v296 = vshrl.u32 %v295, 7
        %v297 = vsub.s32 0, %v296
        %v298 = vrot.slane %v293, %v297
        %v299 = vlaneseq
        %v300 = vshrl.u32 %v299, 7
        %v301 = vsub.s32 1, %v300
        %v302 = vrot.slane %v293, %v301
        %v305 = vadd.f32 %v283, %v298
        %v306 = vadd.f32 %v292, %v302
        %v309 = vcombine.low %v305, %v306
        %v311 = vunpack.c.l.s4 1966171168
        %v312 = vunpack.c.0.s8 %v311
        %v313 = vlaneseq
        %v314 = vshrl.u32 %v313, 7
        %v315 = vsub.s32 %v312, %v314
        %v316 = vrot.slane %v309, %v315
        %v318 = vunpack.c.l.s4 1966171168
        %v319 = vunpack.c.0.s8 %v318
        %v320 = vlaneseq
        %v321 = vshrl.u32 %v320, 7
        %v322 = vsub.s32 %v319, %v321
        %v323 = vrot.slane %v316, %v322
        %v325 = vlaneseq
        %vm326 = vcmp.ge.s32.totalorder %v325, 0
        %vm327 = vcmp.lt.s32.totalorder %v325, 256
        %vm328 = vmand %vm326, %vm327
        %329 = vst.msk [vmem:[%s242] sm:$0x3] %vm328, %v323
        %s330 = sand.u32 %s109, 1
        %s331 = scalar_lea.sflag [#allocation4], %s330
        %s332 = sand.u32 %s109, 1
        %s333 = smul.addr %s332, 2
        %s334 = scalar_lea.vmem [#allocation7], %s333
        // Predicated region
        $region41: #{tpu_custom_call.1} parent=31 // pred_check
          %p335 = pneg %p119
        $region42: #{tpu_custom_call.1} parent=31 // pred_check_branch
          %337 = sbr.rel (%p335) target = $region44
        $region43: #{tpu_custom_call.1} parent=31 // pred_region
          %s338 = smul.u32 2, %s23
          %s340 = ssub.s32 32, 32
          %341 = vsyncadd %s331, %s340
          %s342 = smul.addr %s338, 16
          %s343 = scalar_lea.hbm %s3, %s342
          %s345 = sshll.u32 %s334, 4
          %s346 = int_to_ptr.vmem [resolvable:$true] %s345
          %348 = dma.vmem_to_hbm [thread:$0]  %s346, 32, %s343, %s331
        $region44: #{tpu_custom_call.1} parent=31 // pred_fallthru
          _
      $region32: #{tpu_custom_call.1} parent=5 // pred_fallthru
        _
      %p349 = scmp.le.s32.totalorder 2, %s18
      // Predicated region
      $region45: #{tpu_custom_call.1} parent=5 // pred_check
        %p350 = pneg %p349
      $region46: #{tpu_custom_call.1} parent=5 // pred_check_branch
        %352 = sbr.rel (%p350) target = $region48
      $region47: #{tpu_custom_call.1} parent=5 // pred_region
        %s353 = ssub.s32 %s18, 2
        // Predicated region
        $region49: #{tpu_custom_call.1} parent=47 // pred_check
          %p354 = pneg %p125
        $region50: #{tpu_custom_call.1} parent=47 // pred_check_branch
          %356 = sbr.rel (%p354) target = $region52
        $region51: #{tpu_custom_call.1} parent=47 // pred_region
          %s357 = sand.u32 %s110, 1
          %s358 = scalar_lea.sflag [#allocation4], %s357
          %s359 = sand.u32 %s110, 1
          %s360 = smul.addr %s359, 2
          %s361 = scalar_lea.vmem [#allocation7], %s360
          %362 = dma.done %s358, 32
        $region52: #{tpu_custom_call.1} parent=47 // pred_fallthru
          _
      $region48: #{tpu_custom_call.1} parent=5 // pred_fallthru
        _
    $region6: #{tpu_custom_call.1} parent=1 // loop_footer
      %s22 = sadd.s32 1, %s18
    $region7: #{tpu_custom_call.1} parent=1 // loop_footer_branch
      %17 = sbr.rel target = $region3
    $region8: #{tpu_custom_call.1} parent=1 // loop_exit
      _
    %363 = vsyncpa [#allocation3], 1
    %s364 = scalar_lea.sflag [#allocation3], 1
    %365 = vsyncpa %s364, 1
    %366 = vsyncpa [#allocation6], 1
    %s367 = scalar_lea.sflag [#allocation6], 1
    %368 = vsyncpa %s367, 1
    %369 = vsyncpa [#allocation4], 1
    %s370 = scalar_lea.sflag [#allocation4], 1
    %371 = vsyncpa %s370, 1

</llo_original>
